<compile_context>
chip_gen: v6e
topology: v6e:2x2x1
jax: 0.10.0
libtpu: 0.0.40
codegen_flags: <defaults>
</compile_context>

<pallas_src>
import functools

import jax
import jax.numpy as jnp
from jax.experimental import pallas as pl
from jax.experimental.pallas import tpu as pltpu


def _pos_emb_kernel(x_ref, freqs_ref, phase_ref, out_ref, *, g, num_channels):
    # x_ref:     (T, g)              float32  -- g consecutive flattened x values per row
    # freqs_ref: (1, g*num_channels) float32  -- [f_0..f_{F-1}, f_0..f_{F-1}] tiled g times
    # phase_ref: (1, g*num_channels) float32  -- pi/2 on the "cos" lanes, 0 on "sin" lanes
    # out_ref:   (T, g*num_channels) float32  -- lane-dense embedding tile
    x_blk = x_ref[...]
    t = x_blk.shape[0]
    # Expand each x value across its num_channels embedding lanes
    # (static lane slice -> lane broadcast -> lane concat; no MXU, no gather).
    parts = [
        jnp.broadcast_to(x_blk[:, i:i + 1], (t, num_channels)) for i in range(g)
    ]
    x_exp = parts[0] if g == 1 else jnp.concatenate(parts, axis=1)
    # cos(z) = sin(z + pi/2): a single full-width EUP op covers both halves.
    out_ref[...] = jnp.sin(x_exp * freqs_ref[...] + phase_ref[...])


def positional_embedding(x, num_channels, max_positions=10000, endpoint=False,
                         tile_rows=1024):
    """x: (b, c) float32 -> (b, c * num_channels) float32."""
    assert num_channels % 2 == 0, "num_channels must be even"
    b, c = x.shape
    n = b * c
    half = num_channels // 2

    # Fold g consecutive flattened rows into one lane-dense output row.
    if num_channels <= 128 and 128 % num_channels == 0:
        g = 128 // num_channels
    else:
        g = 1  # still correct; lane-dense whenever num_channels % 128 == 0
    width = g * num_channels

    # Static per-lane frequency and phase rows (same arithmetic as the reference).
    freqs = jnp.arange(half, dtype=jnp.float32)
    freqs = freqs / (half - (1 if endpoint else 0))
    freqs = (1.0 / max_positions) ** freqs                       # (half,)
    freqs_row = jnp.tile(jnp.concatenate([freqs, freqs]), g).reshape(1, width)
    phase_half = jnp.concatenate(
        [jnp.full((half,), jnp.pi / 2, jnp.float32),
         jnp.zeros((half,), jnp.float32)])
    phase_row = jnp.tile(phase_half, g).reshape(1, width)

    # Pad the flattened input so the folded rows tile evenly (sublane multiple of 8
    # and a whole number of grid tiles).  Padded rows are sliced away afterwards.
    rows = -(-n // g)
    if rows <= tile_rows:
        tile_rows = max(8, -(-rows // 8) * 8)
    rows_pad = -(-rows // tile_rows) * tile_rows
    n_pad = rows_pad * g

    x_flat = x.reshape(n).astype(jnp.float32)
    if n_pad != n:
        x_flat = jnp.pad(x_flat, (0, n_pad - n))
    x_folded = x_flat.reshape(rows_pad, g)

    out = pl.pallas_call(
        functools.partial(_pos_emb_kernel, g=g, num_channels=num_channels),
        out_shape=jax.ShapeDtypeStruct((rows_pad, width), jnp.float32),
        grid=(rows_pad // tile_rows,),
        in_specs=[
            pl.BlockSpec((tile_rows, g), lambda i: (i, 0)),
            pl.BlockSpec((1, width), lambda i: (0, 0)),   # resident constants
            pl.BlockSpec((1, width), lambda i: (0, 0)),
        ],
        out_specs=pl.BlockSpec((tile_rows, width), lambda i: (i, 0)),
        compiler_params=pltpu.CompilerParams(
            dimension_semantics=("parallel",)),
    )(x_folded, freqs_row, phase_row)

    flat = out.reshape(-1)
    if n_pad != n:
        flat = flat[: n * num_channels]
    return flat.reshape(b, c * num_channels)


def _reference(x, num_channels, max_positions=10000, endpoint=False):
    b, c = x.shape
    half = num_channels // 2
    freqs = jnp.arange(half, dtype=jnp.float32)
    freqs = freqs / (half - (1 if endpoint else 0))
    freqs = (1.0 / max_positions) ** freqs
    xf = x.reshape(b * c)
    outer = xf[:, None] * freqs[None, :]
    emb = jnp.concatenate([jnp.cos(outer), jnp.sin(outer)], axis=1)
    return emb.reshape(b, c * num_channels)


if __name__ == "__main__":
    key = jax.random.PRNGKey(0)
    b, c = 2, 4
    num_channels = 32  # F = 16, g = 4 -> 128-lane output rows

    x = jax.random.normal(key, (b, c), dtype=jnp.float32) * 10.0

    out = positional_embedding(x, num_channels)
    out = jax.block_until_ready(out)

    ref = _reference(x, num_channels)
    assert out.shape == (b, c * num_channels), out.shape
    assert jnp.allclose(out, ref, atol=1e-4, rtol=1e-5), (
        float(jnp.max(jnp.abs(out - ref))))

    print("KERNEL_OK")
</pallas_src>

<mosaic_0001>
module attributes {stable_mosaic.version = 11 : i64} {
  func.func @_pos_emb_kernel(%arg0: i32, %arg1: memref<8x4xf32, #tpu.memory_space<vmem>>, %arg2: memref<1x128xf32, #tpu.memory_space<vmem>>, %arg3: memref<1x128xf32, #tpu.memory_space<vmem>>, %arg4: memref<8x128xf32, #tpu.memory_space<vmem>>) attributes {dimension_semantics = [#tpu.dimension_semantics<parallel>], iteration_bounds = array<i64: 1>, scalar_prefetch = 0 : i64, scratch_operands = 0 : i64, tpu.core_type = #tpu.core_type<tc>, window_params = [{transform_indices = @transform_0, window_bounds = array<i64: 8, 4>}, {pipeline_mode = #tpu.pipeline_mode<synchronous>, transform_indices = @transform_1, window_bounds = array<i64: 1, 128>}, {pipeline_mode = #tpu.pipeline_mode<synchronous>, transform_indices = @transform_2, window_bounds = array<i64: 1, 128>}, {transform_indices = @transform_3, window_bounds = array<i64: 8, 128>}]} {
    %c0 = arith.constant 0 : index
    %c0_0 = arith.constant 0 : index
    %0 = vector.load %arg1[%c0, %c0_0] : memref<8x4xf32, #tpu.memory_space<vmem>>, vector<8x4xf32>
    %1 = vector.extract_strided_slice %0 {offsets = [0, 0], sizes = [8, 1], strides = [1, 1]} : vector<8x4xf32> to vector<8x1xf32>
    %2 = vector.shape_cast %1 : vector<8x1xf32> to vector<8x1xf32>
    %3 = vector.broadcast %2 : vector<8x1xf32> to vector<8x32xf32>
    %4 = vector.extract_strided_slice %0 {offsets = [0, 1], sizes = [8, 1], strides = [1, 1]} : vector<8x4xf32> to vector<8x1xf32>
    %5 = vector.shape_cast %4 : vector<8x1xf32> to vector<8x1xf32>
    %6 = vector.broadcast %5 : vector<8x1xf32> to vector<8x32xf32>
    %7 = vector.extract_strided_slice %0 {offsets = [0, 2], sizes = [8, 1], strides = [1, 1]} : vector<8x4xf32> to vector<8x1xf32>
    %8 = vector.shape_cast %7 : vector<8x1xf32> to vector<8x1xf32>
    %9 = vector.broadcast %8 : vector<8x1xf32> to vector<8x32xf32>
    %10 = vector.extract_strided_slice %0 {offsets = [0, 3], sizes = [8, 1], strides = [1, 1]} : vector<8x4xf32> to vector<8x1xf32>
    %11 = vector.shape_cast %10 : vector<8x1xf32> to vector<8x1xf32>
    %12 = vector.broadcast %11 : vector<8x1xf32> to vector<8x32xf32>
    %13 = tpu.concatenate %3, %6, %9, %12 in 1 : vector<8x32xf32>, vector<8x32xf32>, vector<8x32xf32>, vector<8x32xf32> -> vector<8x128xf32>
    %c0_1 = arith.constant 0 : index
    %c0_2 = arith.constant 0 : index
    %14 = vector.load %arg2[%c0_1, %c0_2] : memref<1x128xf32, #tpu.memory_space<vmem>>, vector<1x128xf32>
    %15 = vector.broadcast %14 : vector<1x128xf32> to vector<8x128xf32>
    %16 = arith.mulf %13, %15 : vector<8x128xf32>
    %c0_3 = arith.constant 0 : index
    %c0_4 = arith.constant 0 : index
    %17 = vector.load %arg3[%c0_3, %c0_4] : memref<1x128xf32, #tpu.memory_space<vmem>>, vector<1x128xf32>
    %18 = vector.broadcast %17 : vector<1x128xf32> to vector<8x128xf32>
    %19 = arith.addf %16, %18 : vector<8x128xf32>
    %20 = math.sin %19 : vector<8x128xf32>
    %c0_5 = arith.constant 0 : index
    %c0_6 = arith.constant 0 : index
    %21 = vector.load %arg4[%c0_5, %c0_6] : memref<8x128xf32, #tpu.memory_space<vmem>>, vector<8x128xf32>
    tpu.vector_store %arg4[%c0_5, %c0_6], %20 {strides = array<i32>} : memref<8x128xf32, #tpu.memory_space<vmem>>, vector<8x128xf32>,
    return
  }
  func.func @transform_0(%arg0: i32) -> (i32, i32) {
    %c0_i32 = arith.constant 0 : i32
    %c0_i32_0 = arith.constant 0 : i32
    return %arg0, %c0_i32 : i32, i32
  }
  func.func @transform_1(%arg0: i32) -> (i32, i32) {
    %c0_i32 = arith.constant 0 : i32
    %c0_i32_0 = arith.constant 0 : i32
    %c0_i32_1 = arith.constant 0 : i32
    return %c0_i32, %c0_i32_0 : i32, i32
  }
  func.func @transform_2(%arg0: i32) -> (i32, i32) {
    %c0_i32 = arith.constant 0 : i32
    %c0_i32_0 = arith.constant 0 : i32
    %c0_i32_1 = arith.constant 0 : i32
    return %c0_i32, %c0_i32_0 : i32, i32
  }
  func.func @transform_3(%arg0: i32) -> (i32, i32) {
    %c0_i32 = arith.constant 0 : i32
    %c0_i32_0 = arith.constant 0 : i32
    return %arg0, %c0_i32 : i32, i32
  }
}

</mosaic_0001>

<llo_original>
// kernel: tpu_custom_call.1
$region0: #{tpu_custom_call.1}
  #allocation0 [shape = 'u32[]', space=smem, size = 0x4, offset = 0x4, fixed_abs, tag = 'smem constant byte address 0x4 - core index']
  #allocation1 [shape = 'u32[144,128]{1,0:T(1,128)}', space=vmem, size = 0x12000, scoped, tag = 'internal scratch']
  %s0 = inlined_call_operand.vmem [shape: f32[8,4], index: 0, kind: input, shape index: {}]
  %s1 = inlined_call_operand.vmem [shape: f32[1,128], index: 1, kind: input, shape index: {}]
  %s2 = inlined_call_operand.vmem [shape: f32[1,128], index: 2, kind: input, shape index: {}]
  %s3 = inlined_call_operand.hbm [shape: f32[8,128], index: 3, kind: output, shape index: {}]
  %s4 = sld [smem:[#allocation0]]
  $region22: #{tpu_custom_call.1} parent=0
    _
  %s6 = ssub.s32 1, %s4
  %s7 = scalar_select 0, %s6, %s4
  $region1: #{tpu_custom_call.1} parent=0
    #allocation2 [shape = 'u8[4096]{0}', space=vmem, size = 0x1000, scoped, tag = 'output window, operand 0, single buffered']
    #allocation3 [shape = 's32[1]{0}', space=sflag, size = 0x4, scoped, tag = 'scoped memory for tpu_custom_call.1']
    %8 = vsyncpa [#allocation3], 0
    // Predicated region
    $region2: #{tpu_custom_call.1} parent=1 // pred_check
      _
    $region3: #{tpu_custom_call.1} parent=1 // pred_check_branch
      %10 = sbr.rel (0) target = $region5
    $region4: #{tpu_custom_call.1} parent=1 // pred_region
      _
    $region5: #{tpu_custom_call.1} parent=1 // pred_fallthru
      _
    // Predicated region
    $region6: #{tpu_custom_call.1} parent=1 // pred_check
      _
    $region7: #{tpu_custom_call.1} parent=1 // pred_check_branch
      %12 = sbr.rel (0) target = $region9
    $region8: #{tpu_custom_call.1} parent=1 // pred_region
      _
    $region9: #{tpu_custom_call.1} parent=1 // pred_fallthru
      _
    // Predicated region
    $region10: #{tpu_custom_call.1} parent=1 // pred_check
      _
    $region11: #{tpu_custom_call.1} parent=1 // pred_check_branch
      %14 = sbr.rel (0) target = $region13
    $region12: #{tpu_custom_call.1} parent=1 // pred_region
      _
    $region13: #{tpu_custom_call.1} parent=1 // pred_fallthru
      _
    %v15 = vld [vmem:[%s0] sm:$0xff]
    %17 = vset.pattern.permute.xlu0 0
    %18 = vperm.xlu0 %17, %v15
    %v19 = vpop.permute.xlu0 %18
    %21 = vset.pattern.permute.xlu0 1
    %22 = vperm.xlu0 %21, %v15
    %v23 = vpop.permute.xlu0 %22
    %25 = vset.pattern.permute.xlu0 2
    %26 = vperm.xlu0 %25, %v15
    %v27 = vpop.permute.xlu0 %26
    %29 = vset.pattern.permute.xlu0 3
    %30 = vperm.xlu0 %29, %v15
    %v31 = vpop.permute.xlu0 %30
    %vm33 = vcmask 261120
    %v34 = vsel %vm33, %v19, %v23
    %vm35 = vcmask 523264
    %v36 = vsel %vm35, %v34, %v27
    %vm37 = vcmask 785408
    %v38 = vsel %vm37, %v36, %v31
    %v39 = vld [vmem:[%s1] sm:$0x1]
    %v41 = vlaneseq
    %v42 = vshrl.u32 %v41, 7
    %v43 = vsub.s32 0, %v42
    %v44 = vrot.slane %v39, %v43
    %v46 = vmul.f32 %v38, %v44
    %v47 = vld [vmem:[%s2] sm:$0x1]
    %v49 = vlaneseq
    %v50 = vshrl.u32 %v49, 7
    %v51 = vsub.s32 0, %v50
    %v52 = vrot.slane %v47, %v51
    %v54 = vadd.f32 %v46, %v52
    %v55 = vand.u32 2147483647, %v54
    %vm56 = vcmp.le.f32.partialorder %v55, 0.7853982
    %vm57 = vcmp.lt.s32.totalorder %v54, 0
    %v58 = vand.u32 %v54, 2139095040
    %v59 = vshrl.u32 %v58, 23
    %v60 = vsub.s32 %v59, 127
    %v61 = vand.u32 2147483647, %v54
    %v62 = vand.u32 %v61, 8388607
    %v63 = vor.u32 %v62, 8388608
    %v64 = vsub.s32 0, %v63
    %v65 = vadd.s32 %v60, 1
    %vm66 = vcmp.gt.s32.totalorder %v65, 0
    %v67 = vsel %vm66, %v65, 0
    %v68 = vshrl.u32 %v67, 5
    %v69 = vand.u32 %v67, 31
    %v70 = vsub.s32 32, %v69
    %v71 = vshrl.u32 683565275, %v70
    %v72 = vshll.u32 683565275, %v69
    %v73 = vshrl.u32 2475754826, %v70
    %v74 = vor.u32 %v72, %v73
    %v75 = vshll.u32 2475754826, %v69
    %v76 = vshrl.u32 2131351028, %v70
    %v77 = vor.u32 %v75, %v76
    %v78 = vshll.u32 2131351028, %v69
    %v79 = vshrl.u32 2102212464, %v70
    %v80 = vor.u32 %v78, %v79
    %v81 = vshll.u32 2102212464, %v69
    %v82 = vshrl.u32 920167782, %v70
    %v83 = vor.u32 %v81, %v82
    %v84 = vshll.u32 920167782, %v69
    %v85 = vshrl.u32 1326507024, %v70
    %v86 = vor.u32 %v84, %v85
    %vm87 = vcmp.lt.s32.totalorder %v68, 1
    %vm88 = vcmp.lt.s32.totalorder %v68, 2
    %vm89 = vcmp.lt.s32.totalorder %v68, 3
    %vm90 = vcmp.lt.s32.totalorder %v68, 4
    %v91 = vsel %vm87, %v71, %v74
    %v92 = vsel %vm90, %v80, 2102212464
    %v93 = vsel %vm89, %v77, %v92
    %v94 = vsel %vm88, %v91, %v93
    %v95 = vsel %vm87, %v74, %v77
    %v96 = vsel %vm90, %v83, 920167782
    %v97 = vsel %vm89, %v80, %v96
    %v98 = vsel %vm88, %v95, %v97
    %v99 = vsel %vm87, %v77, %v80
    %v100 = vsel %vm90, %v86, 1326507024
    %v101 = vsel %vm89, %v83, %v100
    %v102 = vsel %vm88, %v99, %v101
    %v103 = vshll.u32 %v63, 8
    %v104 = vmul.u32.u64.compose %v103, %v102
    %v105 = vextract.low.u32 %v104
    %v106 = vextract.high.u32 %v104
    %v107 = vmul.u32.u64.compose %v103, %v98
    %v108 = vextract.low.u32 %v107
    %v109 = vextract.high.u32 %v107
    %v110 = vmul.u32 %v103, %v94
    %v111 = vadd.s32 %v106, %v108
    %vm112 = vc.u32 %v106, %v108
    %v113 = vadd.s32 %v109, 1
    %v114 = vsel %vm112, %v113, %v109
    %v115 = vadd.s32 %v110, %v114
    %v116 = vadd.s32 %v115, 536870912
    %v117 = vshrl.u32 %v116, 30
    %v118 = vshll.u32 %v117, 30
    %v119 = vsub.s32 %v115, %v118
    %vm120 = vcmp.lt.s32.totalorder %v119, 0
    %v121 = vsub.s32 0, %v119
    %v122 = vsel %vm120, %v121, %v119
    %v123 = vclz %v122
    %v124 = vsub.s32 %v123, 2
    %vm125 = vcmp.gt.s32.totalorder 0, %v124
    %v126 = vsel %vm125, 0, %v124
    %v127 = vsub.s32 32, %v126
    %v128 = vshll.u32 %v119, %v126
    %v129 = vshrl.u32 %v111, %v127
    %v130 = vor.u32 %v128, %v129
    %v131 = vsub.s32 4294967266, %v126
    %v132 = vadd.s32 %v131, 127
    %v133 = vshll.u32 %v132, 23
    %v134 = vor.u32 4788187, %v133
    %v135 = vand.u32 2147483647, %v134
    %v137 = vcvt.s32.f32 %v130
    %v138 = vmul.f32 %v137, %v135
    %v139 = vxor.u32 %v138, 2147483648
    %v140 = vsel %vm57, %v139, %v138
    %v141 = vsub.s32 4, %v117
    %v142 = vsel %vm57, %v141, %v117
    %v143 = vsel %vm56, %v54, %v140
    %v144 = vsel %vm56, 0, %v142
    %v145 = vcosq.f32.pop %v143
    %v146 = vsinq.f32.pop %v143
    %vm147 = vweird.f32 %v54
    %v148 = vadd.s32 %v144, 3
    %v149 = vand.u32 %v148, 3
    %vm150 = vcmp.lt.s32.totalorder %v149, 2
    %vm151 = vcmp.eq.s32.totalorder %v149, 0
    %v152 = vxor.u32 %v146, 2147483648
    %v153 = vsel %vm151, %v145, %v152
    %vm154 = vcmp.eq.s32.totalorder %v149, 2
    %v155 = vxor.u32 %v145, 2147483648
    %v156 = vsel %vm154, %v155, %v146
    %v157 = vsel %vm150, %v153, %v156
    %v158 = vsel %vm147, nan, %v157
    %159 = vst [vmem:[#allocation2] sm:$0xff] %v158
    // Predicated region
    $region14: #{tpu_custom_call.1} parent=1 // pred_check
      _
    $region15: #{tpu_custom_call.1} parent=1 // pred_check_branch
      %161 = sbr.rel (0) target = $region17
    $region16: #{tpu_custom_call.1} parent=1 // pred_region
      %s163 = ssub.s32 128, 128
      %164 = vsyncadd [#allocation3], %s163
      %s166 = sshll.u32 [#allocation2], 4
      %s167 = int_to_ptr.vmem [resolvable:$true] %s166
      %169 = dma.vmem_to_hbm [thread:$0]  %s167, 128, %s3, [#allocation3]
    $region17: #{tpu_custom_call.1} parent=1 // pred_fallthru
      _
    // Predicated region
    $region18: #{tpu_custom_call.1} parent=1 // pred_check
      _
    $region19: #{tpu_custom_call.1} parent=1 // pred_check_branch
      %171 = sbr.rel (0) target = $region21
    $region20: #{tpu_custom_call.1} parent=1 // pred_region
      %172 = dma.done [#allocation3], 128
    $region21: #{tpu_custom_call.1} parent=1 // pred_fallthru
      _
    %173 = vsyncpa [#allocation3], 1

</llo_original>
